<compile_context>
chip_gen: v5e
topology: v5e:2x2
jax: 0.10.0
libtpu: 0.0.40
codegen_flags: <defaults>
</compile_context>

<pallas_src>
import functools

import jax
import jax.numpy as jnp
from jax.experimental import pallas as pl
from jax.experimental.pallas import tpu as pltpu


def _round_up(x, m):
    return ((x + m - 1) // m) * m


def _divisor_tile(d, max_tile, align):
    """Largest multiple of `align` that divides `d` (itself a multiple of
    `align`) and is <= max_tile; falls back to `align`."""
    if d <= max_tile:
        return d
    t = max(align, (max_tile // align) * align)
    while t > align:
        if d % t == 0:
            return t
        t -= align
    return align


def _vmem_budget_and_max_tile():
    """Generation-aware VMEM budget (bytes) and max M/N tile size."""
    try:
        cap = int(pltpu.get_tpu_info().vmem_capacity_bytes)
    except Exception:
        cap = 64 * 1024 * 1024  # be conservative (v7x-sized VMEM)
    if cap >= 100 * 1024 * 1024:          # v5e / v6e: 128 MiB physical VMEM
        return 88 * 1024 * 1024, 1024
    return 44 * 1024 * 1024, 512          # v7x: 64 MiB physical VMEM


def _select_tiles(batch, kp, np_, compute_dtype, out_dtype):
    """Pick (tm, tn, tk, vmem_limit_bytes) dividing the rounded problem dims."""
    in_bytes = jnp.dtype(compute_dtype).itemsize
    out_bytes = jnp.dtype(out_dtype).itemsize
    sub = 16 if in_bytes <= 2 else 8      # bf16 min sublane tile is 16
    mp = _round_up(batch, sub)

    budget, max_mn = _vmem_budget_and_max_tile()
    max_tk = 2048 if in_bytes <= 2 else 1024

    tm = _divisor_tile(mp, max_mn, sub)
    tn = _divisor_tile(np_, max_mn, 128)
    tk = _divisor_tile(kp, max_tk, 128)

    # v7x megacore: with a single M tile, split N so both TensorCores get work.
    if mp // tm == 1 and np_ // tn == 1 and tn % 256 == 0:
        tn //= 2

    def footprint(tm_, tn_, tk_):
        # double-buffered x / w / bias tiles + double-buffered out + f32 acc
        return (2 * (tm_ * tk_ + tk_ * tn_ + tn_) * in_bytes
                + 2 * tm_ * tn_ * out_bytes
                + tm_ * tn_ * 4)

    # Safety shrink (max config already fits the budget, but stay defensive).
    while footprint(tm, tn, tk) > budget:
        if tk > 128:
            tk = _divisor_tile(kp, max(128, tk // 2), 128)
        elif tn > 128:
            tn = _divisor_tile(np_, max(128, tn // 2), 128)
        elif tm > sub:
            tm = _divisor_tile(mp, max(sub, tm // 2), sub)
        else:
            break

    return tm, tn, tk, int(budget)


def _linear_kernel_f32(x_ref, wt_ref, b_ref, o_ref):
    """f32 output: accumulate straight into the resident output block."""
    k = pl.program_id(2)

    @pl.when(k == 0)
    def _():
        o_ref[...] = jnp.broadcast_to(b_ref[...], o_ref.shape).astype(o_ref.dtype)

    o_ref[...] += jnp.dot(
        x_ref[...], wt_ref[...], preferred_element_type=jnp.float32
    )


def _linear_kernel_acc(x_ref, wt_ref, b_ref, o_ref, acc_ref):
    """Low-precision output: f32 scratch accumulator + fused bias epilogue."""
    k = pl.program_id(2)

    @pl.when(k == 0)
    def _():
        acc_ref[...] = jnp.zeros_like(acc_ref)

    acc_ref[...] += jnp.dot(
        x_ref[...], wt_ref[...], preferred_element_type=jnp.float32
    )

    @pl.when(k == pl.num_programs(2) - 1)
    def _():
        o_ref[...] = (acc_ref[...] + b_ref[...].astype(jnp.float32)).astype(
            o_ref.dtype
        )


@functools.partial(
    jax.jit, static_argnames=("n_out", "tm", "tn", "tk", "vmem_limit_bytes")
)
def _linear_call(x, w_t_pad, b_pad, *, n_out, tm, tn, tk, vmem_limit_bytes):
    B, K = x.shape
    Kp, Np = w_t_pad.shape
    out_dtype = x.dtype
    compute_dtype = w_t_pad.dtype

    Mp = _round_up(B, tm)

    xp = x.astype(compute_dtype) if x.dtype != compute_dtype else x
    if (Mp, Kp) != (B, K):
        xp = jnp.pad(xp, ((0, Mp - B), (0, Kp - K)))

    grid = (Mp // tm, Np // tn, Kp // tk)

    in_bytes = jnp.dtype(compute_dtype).itemsize
    out_bytes = jnp.dtype(out_dtype).itemsize
    cost = pl.CostEstimate(
        flops=2 * Mp * Np * Kp,
        transcendentals=0,
        bytes_accessed=(
            Mp * Kp * in_bytes * grid[1]          # x re-streamed per N tile
            + Kp * Np * in_bytes * grid[0]        # w re-streamed per M tile
            + Np * jnp.dtype(b_pad.dtype).itemsize * grid[0]
            + Mp * Np * out_bytes
        ),
    )

    if out_dtype == jnp.float32:
        kernel = _linear_kernel_f32
        scratch = []
    else:
        kernel = _linear_kernel_acc
        scratch = [pltpu.VMEM((tm, tn), jnp.float32)]

    out_padded = pl.pallas_call(
        kernel,
        out_shape=jax.ShapeDtypeStruct((Mp, Np), out_dtype),
        grid_spec=pltpu.PrefetchScalarGridSpec(
            num_scalar_prefetch=0,
            grid=grid,
            in_specs=[
                pl.BlockSpec((tm, tk), lambda i, j, k: (i, k)),   # x tile
                pl.BlockSpec((tk, tn), lambda i, j, k: (k, j)),   # w_t tile
                pl.BlockSpec((1, tn), lambda i, j, k: (0, j)),    # bias tile
            ],
            out_specs=pl.BlockSpec((tm, tn), lambda i, j, k: (i, j)),
            scratch_shapes=scratch,
        ),
        compiler_params=pltpu.CompilerParams(
            dimension_semantics=("parallel", "parallel", "arbitrary"),
            vmem_limit_bytes=vmem_limit_bytes,
        ),
        cost_estimate=cost,
    )(xp, w_t_pad, b_pad)

    if Mp == B and Np == n_out:
        return out_padded
    return out_padded[:B, :n_out]


def linear_forward(x, w_t_pad, b_pad, *, n_out):
    """x: (B, K); w_t_pad: (Kp, Np) pre-transposed/padded weight; b_pad: (1, Np)."""
    B, K = x.shape
    Kp, Np = w_t_pad.shape
    assert Kp >= K and Kp % 128 == 0 and Np % 128 == 0 and Np >= n_out
    tm, tn, tk, vmem_limit = _select_tiles(B, Kp, Np, w_t_pad.dtype, x.dtype)
    return _linear_call(
        x, w_t_pad, b_pad, n_out=n_out, tm=tm, tn=tn, tk=tk,
        vmem_limit_bytes=vmem_limit,
    )


class LinearPallas:
    """JAX/Pallas mirror of the PyTorch Linear module (forward pass only).

    forward(x) = x @ w.T + b.  `act` only scales the parameter init (exactly
    as in the reference module); it is NOT applied in forward.
    `compute_dtype=jnp.bfloat16` streams x/w to the MXU in bf16 (f32 accum,
    f32 output) for the fast path; default f32 matches the reference exactly.
    """

    def __init__(self, input_dim, output_dim, act=None, key=None,
                 compute_dtype=jnp.float32):
        self.input_dim = input_dim
        self.output_dim = output_dim
        self.gain = 1.0
        self.sd = 1.0
        if act is not None:
            self.sd = (2.0 / (self.output_dim + self.input_dim)) ** 0.5
        if act == 'relu':
            self.gain = 2.0 ** 0.5
        if act == 'tanh':
            self.gain = 5.0 / 3.0
        if act == 'leaky':
            # Mirrors the reference module verbatim (its 'leaky' gain has no sqrt).
            self.gain = 2.0 / (1 + 0.05 ** 2)
        if key is None:
            key = jax.random.PRNGKey(0)
        kw, kb = jax.random.split(key)
        std = self.gain * self.sd
        # PyTorch layout: w (output_dim, input_dim), b (1, output_dim).
        self.w = std * jax.random.normal(kw, (output_dim, input_dim), jnp.float32)
        self.b = std * jax.random.normal(kb, (1, output_dim), jnp.float32)

        # One-time static relayout + padding (hoisted out of forward):
        # weight -> (Kp, Np) in the MXU compute dtype; bias stays f32.
        self.compute_dtype = compute_dtype
        kp = _round_up(input_dim, 128)
        np_ = _round_up(output_dim, 128)
        w_t = self.w.T.astype(compute_dtype)
        self.w_t_pad = jnp.pad(
            w_t, ((0, kp - input_dim), (0, np_ - output_dim))
        )
        self.b_pad = jnp.pad(self.b, ((0, 0), (0, np_ - output_dim)))

    def forward(self, x):
        return linear_forward(
            x, self.w_t_pad, self.b_pad, n_out=self.output_dim
        )

    # TODO(synk): backward / param / zero_grad (optimizer-state bookkeeping) are
    # training-only and not part of the forward-pass kernel.


if __name__ == "__main__":
    key = jax.random.PRNGKey(0)
    k_in, k_p1, k_p2 = jax.random.split(key, 3)

    batch, input_dim, output_dim = 8, 32, 16
    x = jax.random.normal(k_in, (batch, input_dim), jnp.float32)

    # Exact f32 path (matches the PyTorch module numerics).
    layer = LinearPallas(input_dim, output_dim, act='relu', key=k_p1)
    out = jax.block_until_ready(layer.forward(x))
    ref = x @ layer.w.T + layer.b
    assert out.shape == (batch, output_dim), out.shape
    assert jnp.allclose(out, ref, atol=1e-4, rtol=1e-4), float(
        jnp.max(jnp.abs(out - ref))
    )

    # bf16-operand fast path (per perf review): bf16 MXU feeds, f32 accum/out.
    layer16 = LinearPallas(input_dim, output_dim, act='tanh', key=k_p2,
                           compute_dtype=jnp.bfloat16)
    out16 = jax.block_until_ready(layer16.forward(x))
    ref16 = x @ layer16.w.T + layer16.b
    assert out16.shape == (batch, output_dim), out16.shape
    assert jnp.allclose(out16, ref16, atol=5e-2, rtol=5e-2), float(
        jnp.max(jnp.abs(out16 - ref16))
    )

    print("KERNEL_OK")
</pallas_src>

<mosaic_0001>
module attributes {stable_mosaic.version = 11 : i64} {
  func.func @_linear_kernel_f32(%arg0: i32, %arg1: i32, %arg2: i32, %arg3: memref<8x128xf32, #tpu.memory_space<vmem>>, %arg4: memref<128x128xf32, #tpu.memory_space<vmem>>, %arg5: memref<1x128xf32, #tpu.memory_space<vmem>>, %arg6: memref<8x128xf32, #tpu.memory_space<vmem>>) attributes {dimension_semantics = [#tpu.dimension_semantics<parallel>, #tpu.dimension_semantics<parallel>, #tpu.dimension_semantics<arbitrary>], iteration_bounds = array<i64: 1, 1, 1>, scalar_prefetch = 0 : i64, scratch_operands = 0 : i64, tpu.core_type = #tpu.core_type<tc>, window_params = [{transform_indices = @transform_0, window_bounds = array<i64: 8, 128>}, {transform_indices = @transform_1, window_bounds = array<i64: 128, 128>}, {transform_indices = @transform_2, window_bounds = array<i64: 1, 128>}, {transform_indices = @transform_3, window_bounds = array<i64: 8, 128>}]} {
    %c0_i32 = arith.constant 0 : i32
    %0 = arith.cmpi eq, %arg2, %c0_i32 : i32
    %1 = arith.extui %0 : i1 to i32
    %c0_i32_0 = arith.constant 0 : i32
    %2 = arith.cmpi ne, %1, %c0_i32_0 : i32
    scf.if %2 {
      %c0_8 = arith.constant 0 : index
      %c0_9 = arith.constant 0 : index
      %9 = vector.load %arg5[%c0_8, %c0_9] : memref<1x128xf32, #tpu.memory_space<vmem>>, vector<1x128xf32>
      %10 = vector.shape_cast %9 : vector<1x128xf32> to vector<1x128xf32>
      %11 = vector.broadcast %10 : vector<1x128xf32> to vector<8x128xf32>
      %c0_10 = arith.constant 0 : index
      %c0_11 = arith.constant 0 : index
      %12 = vector.load %arg6[%c0_10, %c0_11] : memref<8x128xf32, #tpu.memory_space<vmem>>, vector<8x128xf32>
      tpu.vector_store %arg6[%c0_10, %c0_11], %11 {strides = array<i32>} : memref<8x128xf32, #tpu.memory_space<vmem>>, vector<8x128xf32>,
    } else {
    }
    %c0 = arith.constant 0 : index
    %c0_1 = arith.constant 0 : index
    %3 = vector.load %arg6[%c0, %c0_1] : memref<8x128xf32, #tpu.memory_space<vmem>>, vector<8x128xf32>
    %c0_2 = arith.constant 0 : index
    %c0_3 = arith.constant 0 : index
    %4 = vector.load %arg3[%c0_2, %c0_3] : memref<8x128xf32, #tpu.memory_space<vmem>>, vector<8x128xf32>
    %c0_4 = arith.constant 0 : index
    %c0_5 = arith.constant 0 : index
    %5 = vector.load %arg4[%c0_4, %c0_5] : memref<128x128xf32, #tpu.memory_space<vmem>>, vector<128x128xf32>
    %cst = arith.constant dense<0.000000e+00> : vector<8x128xf32>
    %6 = tpu.matmul %4, %5, %cst {dimension_numbers = #tpu.dot_dimension_numbers<[1], [0], [0], [1], [0, 0, 1, 1], [], []>} : vector<8x128xf32>, vector<128x128xf32>, vector<8x128xf32> -> vector<8x128xf32>
    %7 = arith.addf %3, %6 : vector<8x128xf32>
    %c0_6 = arith.constant 0 : index
    %c0_7 = arith.constant 0 : index
    %8 = vector.load %arg6[%c0_6, %c0_7] : memref<8x128xf32, #tpu.memory_space<vmem>>, vector<8x128xf32>
    tpu.vector_store %arg6[%c0_6, %c0_7], %7 {strides = array<i32>} : memref<8x128xf32, #tpu.memory_space<vmem>>, vector<8x128xf32>,
    return
  }
  func.func @transform_0(%arg0: i32, %arg1: i32, %arg2: i32) -> (i32, i32) {
    %c0_i32 = arith.constant 0 : i32
    return %arg0, %arg2 : i32, i32
  }
  func.func @transform_1(%arg0: i32, %arg1: i32, %arg2: i32) -> (i32, i32) {
    %c0_i32 = arith.constant 0 : i32
    return %arg2, %arg1 : i32, i32
  }
  func.func @transform_2(%arg0: i32, %arg1: i32, %arg2: i32) -> (i32, i32) {
    %c0_i32 = arith.constant 0 : i32
    %c0_i32_0 = arith.constant 0 : i32
    return %c0_i32, %arg1 : i32, i32
  }
  func.func @transform_3(%arg0: i32, %arg1: i32, %arg2: i32) -> (i32, i32) {
    %c0_i32 = arith.constant 0 : i32
    return %arg0, %arg1 : i32, i32
  }
}

</mosaic_0001>

<llo_original>
// kernel: _linear_call.1
$region0: #{_linear_call.1}
  #allocation0 [shape = 'u32[]', space=smem, size = 0x4, offset = 0x4, fixed_abs, tag = 'smem constant byte address 0x4 - core index']
  #allocation1 [shape = 'u32[72,128]{1,0:T(1,128)}', space=vmem, size = 0x9000, scoped, tag = 'internal scratch']
  %s0 = inlined_call_operand.vmem [shape: f32[8,128], index: 0, kind: input, shape index: {}]
  %s1 = inlined_call_operand.hbm [shape: f32[128,128], index: 1, kind: input, shape index: {}]
  %s2 = inlined_call_operand.vmem [shape: f32[1,128], index: 2, kind: input, shape index: {}]
  %s3 = inlined_call_operand.hbm [shape: f32[8,128], index: 3, kind: output, shape index: {}]
  %s4 = sld [smem:[#allocation0]]
  $region30: #{_linear_call.1} parent=0
    _
  %s6 = ssub.s32 1, %s4
  %s7 = scalar_select 0, %s6, %s4
  $region1: #{_linear_call.1} parent=0
    #allocation2 [shape = 'u8[65536]{0}', space=vmem, size = 0x10000, scoped, tag = 'input window, operand 1, single buffered']
    #allocation3 [shape = 's32[1]{0}', space=sflag, size = 0x4, scoped, tag = 'scoped memory for _linear_call.1']
    #allocation4 [shape = 's32[1]{0}', space=sflag, size = 0x4, scoped, tag = 'scoped memory for _linear_call.1']
    #allocation5 [shape = 'u8[4096]{0}', space=vmem, size = 0x1000, scoped, tag = 'output window, operand 0, single buffered']
    %8 = vsyncpa [#allocation3], 0
    %9 = vsyncpa [#allocation4], 0
    // Predicated region
    $region2: #{_linear_call.1} parent=1 // pred_check
      _
    $region3: #{_linear_call.1} parent=1 // pred_check_branch
      %11 = sbr.rel (0) target = $region5
    $region4: #{_linear_call.1} parent=1 // pred_region
      _
    $region5: #{_linear_call.1} parent=1 // pred_fallthru
      _
    // Predicated region
    $region6: #{_linear_call.1} parent=1 // pred_check
      _
    $region7: #{_linear_call.1} parent=1 // pred_check_branch
      %13 = sbr.rel (0) target = $region9
    $region8: #{_linear_call.1} parent=1 // pred_region
      %15 = vsyncadd [#allocation3], 0
      %s16 = sshll.u32 %s1, 4
      %s17 = int_to_ptr.hbm [resolvable:$true] %s16
      %s18 = sshll.u32 [#allocation2], 4
      %s19 = int_to_ptr.vmem [resolvable:$true] %s18
      %24 = dma.hbm_to_vmem [thread:$0]  %s17, 2048, %s19, [#allocation3], 128, 128, 8
    $region9: #{_linear_call.1} parent=1 // pred_fallthru
      _
    // Predicated region
    $region10: #{_linear_call.1} parent=1 // pred_check
      _
    $region11: #{_linear_call.1} parent=1 // pred_check_branch
      %26 = sbr.rel (0) target = $region13
    $region12: #{_linear_call.1} parent=1 // pred_region
      _
    $region13: #{_linear_call.1} parent=1 // pred_fallthru
      _
    // Predicated region
    $region14: #{_linear_call.1} parent=1 // pred_check
      _
    $region15: #{_linear_call.1} parent=1 // pred_check_branch
      %28 = sbr.rel (0) target = $region17
    $region16: #{_linear_call.1} parent=1 // pred_region
      %30 = dma.done [#allocation3], 2048
    $region17: #{_linear_call.1} parent=1 // pred_fallthru
      _
    %p31 = scmp.eq.s32.totalorder 0, 0
    // Predicated region
    $region18: #{_linear_call.1} parent=1 // pred_check
      %p32 = pneg %p31
    $region19: #{_linear_call.1} parent=1 // pred_check_branch
      %34 = sbr.rel (%p32) target = $region21
    $region20: #{_linear_call.1} parent=1 // pred_region
      %v35 = vld [vmem:[%s2] sm:$0x1]
      %v37 = vperm.slane %v35, 0
      %39 = vst [vmem:[#allocation5] sm:$0xff] %v37
    $region21: #{_linear_call.1} parent=1 // pred_fallthru
      _
    %v40 = vld [vmem:[#allocation5] sm:$0xff]
    %v41 = vld [vmem:[%s0] sm:$0xff]
    %v42 = vld [vmem:[#allocation2] sm:$0xff]
    %v43 = vld [vmem:[#allocation2 + $0x8] sm:$0xff]
    %v44 = vld [vmem:[#allocation2 + $0x10] sm:$0xff]
    %v45 = vld [vmem:[#allocation2 + $0x18] sm:$0xff]
    %v46 = vld [vmem:[#allocation2 + $0x20] sm:$0xff]
    %v47 = vld [vmem:[#allocation2 + $0x28] sm:$0xff]
    %v48 = vld [vmem:[#allocation2 + $0x30] sm:$0xff]
    %v49 = vld [vmem:[#allocation2 + $0x38] sm:$0xff]
    %v50 = vld [vmem:[#allocation2 + $0x40] sm:$0xff]
    %v51 = vld [vmem:[#allocation2 + $0x48] sm:$0xff]
    %v52 = vld [vmem:[#allocation2 + $0x50] sm:$0xff]
    %v53 = vld [vmem:[#allocation2 + $0x58] sm:$0xff]
    %v54 = vld [vmem:[#allocation2 + $0x60] sm:$0xff]
    %v55 = vld [vmem:[#allocation2 + $0x68] sm:$0xff]
    %v56 = vld [vmem:[#allocation2 + $0x70] sm:$0xff]
    %v57 = vld [vmem:[#allocation2 + $0x78] sm:$0xff]
    %58 = vmatpush.msra.mxu0 %v57
    %59 = vmatpush.msra.mxu0 %v56
    %60 = vmatpush.msra.mxu0 %v55
    %61 = vmatpush.msra.mxu0 %v54
    %62 = vmatpush.msra.mxu0 %v53
    %63 = vmatpush.msra.mxu0 %v52
    %64 = vmatpush.msra.mxu0 %v51
    %65 = vmatpush.msra.mxu0 %v50
    %66 = vmatpush.msra.mxu0 %v49
    %67 = vmatpush.msra.mxu0 %v48
    %68 = vmatpush.msra.mxu0 %v47
    %69 = vmatpush.msra.mxu0 %v46
    %70 = vmatpush.msra.mxu0 %v45
    %71 = vmatpush.msra.mxu0 %v44
    %72 = vmatpush.msra.mxu0 %v43
    %73 = vmatpush.msra.mxu0 %v42
    %74 = vmatmul.f32.gmra.mxu0 %v41
    %v75 = vpop.f32.mrf.mxu0
    %v76 = vadd.f32 0.0, %v75
    %77 = vdwg.mxu0
    %v78 = vadd.f32 %v40, %v76
    %79 = vst [vmem:[#allocation5] sm:$0xff] %v78
    // Predicated region
    $region22: #{_linear_call.1} parent=1 // pred_check
      _
    $region23: #{_linear_call.1} parent=1 // pred_check_branch
      %81 = sbr.rel (0) target = $region25
    $region24: #{_linear_call.1} parent=1 // pred_region
      %83 = vsyncadd [#allocation4], 0
      %s85 = sshll.u32 [#allocation5], 4
      %s86 = int_to_ptr.vmem [resolvable:$true] %s85
      %s87 = sshll.u32 %s3, 4
      %s88 = int_to_ptr.hbm [resolvable:$true] %s87
      %90 = dma.vmem_to_hbm [thread:$0]  %s86, 128, %s88, [#allocation4]
    $region25: #{_linear_call.1} parent=1 // pred_fallthru
      _
    // Predicated region
    $region26: #{_linear_call.1} parent=1 // pred_check
      _
    $region27: #{_linear_call.1} parent=1 // pred_check_branch
      %92 = sbr.rel (0) target = $region29
    $region28: #{_linear_call.1} parent=1 // pred_region
      %94 = dma.done [#allocation4], 128
    $region29: #{_linear_call.1} parent=1 // pred_fallthru
      _
    %95 = vsyncpa [#allocation3], 1
    %96 = vsyncpa [#allocation4], 1

</llo_original>
